<compile_context>
chip_gen: v7x
topology: tpu7x:2x2x1
jax: 0.10.0
libtpu: 0.0.40
codegen_flags: <defaults>
</compile_context>

<pallas_src>
import functools

import jax
import jax.numpy as jnp
from jax.experimental import pallas as pl
from jax.experimental.pallas import tpu as pltpu


def _label_smoothing_kernel(pred_ref, tgt_ref, out_ref, *,
                            confidence, smooth_val, num_classes):
    # pred_ref: (block_rows, C) in VMEM, tgt_ref: (block_rows, 1) int32.
    x = pred_ref[...].astype(jnp.float32)                        # (br, C)

    # numerically-stable logsumexp along the class (lane) axis
    m = jnp.max(x, axis=-1, keepdims=True)                       # (br, 1)
    lse = jnp.log(jnp.sum(jnp.exp(x - m), axis=-1, keepdims=True)) + m

    # pieces needed for the algebraically-folded smoothed cross entropy
    sum_x = jnp.sum(x, axis=-1, keepdims=True)                   # (br, 1)
    tgt = tgt_ref[...]                                           # (br, 1) int32
    col = jax.lax.broadcasted_iota(jnp.int32, x.shape, 1)        # (br, C)
    x_tgt = jnp.sum(jnp.where(col == tgt, x, 0.0),
                    axis=-1, keepdims=True)                      # (br, 1)

    # sum_c true_dist * logp
    #   = smooth_val * (sum_c x - C*lse) + (confidence - smooth_val)*(x[tgt]-lse)
    row_loss = -(jnp.float32(smooth_val) * (sum_x - jnp.float32(num_classes) * lse)
                 + jnp.float32(confidence - smooth_val) * (x_tgt - lse))

    out_ref[...] = row_loss                                      # (br, 1)


def _pick_block_rows(batch, num_classes, requested):
    if requested is not None:
        br = max(8, (requested // 8) * 8)
    else:
        # ~6 MiB per pipeline buffer for the pred tile -> double-buffered fits
        # comfortably under every generation's scoped-VMEM limit.
        per_buffer_bytes = 6 * 1024 * 1024
        br = per_buffer_bytes // (max(num_classes, 1) * 4)
        br = max(8, min(1024, (br // 8) * 8))
    # no point tiling finer than the (8-padded) batch itself
    batch_pad8 = -(-batch // 8) * 8
    return min(br, batch_pad8)


def label_smoothing_loss(pred, target, *, classes, smoothing=0.1,
                         block_rows=None):
    """pred: (B, C) float32/bfloat16, target: (B,) int. Returns scalar f32."""
    B, C = pred.shape
    assert C == classes

    confidence = 1.0 - smoothing
    smooth_val = smoothing / (classes - 1)

    br = _pick_block_rows(B, C, block_rows)
    num_blocks = -(-B // br)
    B_pad = num_blocks * br

    if B_pad != B:
        pred = jnp.pad(pred, ((0, B_pad - B), (0, 0)))
        target = jnp.pad(target, ((0, B_pad - B),))
    tgt2d = target.astype(jnp.int32).reshape(B_pad, 1)

    kernel = functools.partial(
        _label_smoothing_kernel,
        confidence=confidence,
        smooth_val=smooth_val,
        num_classes=C,
    )

    per_row = pl.pallas_call(
        kernel,
        out_shape=jax.ShapeDtypeStruct((B_pad, 1), jnp.float32),
        grid_spec=pltpu.PrefetchScalarGridSpec(
            num_scalar_prefetch=0,
            grid=(num_blocks,),
            in_specs=[
                pl.BlockSpec((br, C), lambda i: (i, 0)),
                pl.BlockSpec((br, 1), lambda i: (i, 0)),
            ],
            out_specs=pl.BlockSpec((br, 1), lambda i: (i, 0)),
        ),
        compiler_params=pltpu.CompilerParams(
            dimension_semantics=("parallel",),
            vmem_limit_bytes=32 * 1024 * 1024,
        ),
    )(pred, tgt2d)

    # drop padded rows, mean over the real batch (done in plain JAX)
    return jnp.mean(per_row[:B, 0])


def _reference(pred, target, *, classes, smoothing=0.1):
    # pure-JAX reference mirroring the PyTorch module
    logp = jax.nn.log_softmax(pred.astype(jnp.float32), axis=-1)
    true_dist = jnp.full_like(logp, smoothing / (classes - 1))
    true_dist = true_dist.at[jnp.arange(pred.shape[0]), target].set(1.0 - smoothing)
    return jnp.mean(jnp.sum(-true_dist * logp, axis=-1))


if __name__ == "__main__":
    key = jax.random.PRNGKey(0)

    # case 1: batch a multiple of 8
    B1, C1 = 8, 32
    k1p, k1t, k2p, k2t = jax.random.split(key, 4)
    pred1 = jax.random.normal(k1p, (B1, C1), dtype=jnp.float32)
    tgt1 = jax.random.randint(k1t, (B1,), 0, C1, dtype=jnp.int32)
    loss1 = jax.block_until_ready(
        label_smoothing_loss(pred1, tgt1, classes=C1, smoothing=0.1))
    ref1 = _reference(pred1, tgt1, classes=C1, smoothing=0.1)
    assert jnp.allclose(loss1, ref1, atol=1e-5, rtol=1e-5), (loss1, ref1)

    # case 2: batch NOT a multiple of the block size (exercises the padding path)
    B2, C2 = 10, 32
    pred2 = jax.random.normal(k2p, (B2, C2), dtype=jnp.float32)
    tgt2 = jax.random.randint(k2t, (B2,), 0, C2, dtype=jnp.int32)
    loss2 = jax.block_until_ready(
        label_smoothing_loss(pred2, tgt2, classes=C2, smoothing=0.1))
    ref2 = _reference(pred2, tgt2, classes=C2, smoothing=0.1)
    assert jnp.allclose(loss2, ref2, atol=1e-5, rtol=1e-5), (loss2, ref2)

    print("KERNEL_OK")
</pallas_src>

<mosaic_0001>
module attributes {stable_mosaic.version = 11 : i64} {
  func.func @_label_smoothing_kernel(%arg0: i32, %arg1: memref<8x32xf32, #tpu.memory_space<vmem>>, %arg2: memref<8x1xi32, #tpu.memory_space<vmem>>, %arg3: memref<8x1xf32, #tpu.memory_space<vmem>>) attributes {dimension_semantics = [#tpu.dimension_semantics<parallel>], iteration_bounds = array<i64: 1>, scalar_prefetch = 0 : i64, scratch_operands = 0 : i64, tpu.core_type = #tpu.core_type<tc>, window_params = [{transform_indices = @transform_0, window_bounds = array<i64: 8, 32>}, {transform_indices = @transform_1, window_bounds = array<i64: 8, 1>}, {transform_indices = @transform_2, window_bounds = array<i64: 8, 1>}]} {
    %c0 = arith.constant 0 : index
    %c0_0 = arith.constant 0 : index
    %0 = vector.load %arg1[%c0, %c0_0] : memref<8x32xf32, #tpu.memory_space<vmem>>, vector<8x32xf32>
    %cst = arith.constant dense<0xFF800000> : vector<8xf32>
    %1 = vector.multi_reduction <maximumf>, %0, %cst [1] : vector<8x32xf32> to vector<8xf32>
    %2 = vector.shape_cast %1 : vector<8xf32> to vector<8x1xf32>
    %3 = vector.broadcast %2 : vector<8x1xf32> to vector<8x32xf32>
    %4 = arith.subf %0, %3 : vector<8x32xf32>
    %5 = math.exp %4 : vector<8x32xf32>
    %cst_1 = arith.constant dense<0.000000e+00> : vector<8xf32>
    %6 = vector.multi_reduction <add>, %5, %cst_1 [1] : vector<8x32xf32> to vector<8xf32>
    %7 = vector.shape_cast %6 : vector<8xf32> to vector<8x1xf32>
    %8 = math.log %7 : vector<8x1xf32>
    %9 = arith.addf %8, %2 : vector<8x1xf32>
    %cst_2 = arith.constant dense<0.000000e+00> : vector<8xf32>
    %10 = vector.multi_reduction <add>, %0, %cst_2 [1] : vector<8x32xf32> to vector<8xf32>
    %11 = vector.shape_cast %10 : vector<8xf32> to vector<8x1xf32>
    %c0_3 = arith.constant 0 : index
    %c0_4 = arith.constant 0 : index
    %12 = vector.load %arg2[%c0_3, %c0_4] : memref<8x1xi32, #tpu.memory_space<vmem>>, vector<8x1xi32>
    %13 = tpu.iota {dimensions = array<i32: 1>} : vector<8x32xi32>
    %14 = vector.broadcast %12 : vector<8x1xi32> to vector<8x32xi32>
    %15 = arith.cmpi eq, %13, %14 : vector<8x32xi32>
    %cst_5 = arith.constant 0.000000e+00 : f32
    %16 = vector.broadcast %cst_5 : f32 to vector<8x32xf32>
    %17 = arith.select %15, %0, %16 : vector<8x32xi1>, vector<8x32xf32>
    %cst_6 = arith.constant dense<0.000000e+00> : vector<8xf32>
    %18 = vector.multi_reduction <add>, %17, %cst_6 [1] : vector<8x32xf32> to vector<8xf32>
    %19 = vector.shape_cast %18 : vector<8xf32> to vector<8x1xf32>
    %cst_7 = arith.constant 3.200000e+01 : f32
    %20 = vector.broadcast %cst_7 : f32 to vector<8x1xf32>
    %21 = arith.mulf %20, %9 : vector<8x1xf32>
    %22 = arith.subf %11, %21 : vector<8x1xf32>
    %cst_8 = arith.constant 0.0032258064 : f32
    %23 = vector.broadcast %cst_8 : f32 to vector<8x1xf32>
    %24 = arith.mulf %23, %22 : vector<8x1xf32>
    %25 = arith.subf %19, %9 : vector<8x1xf32>
    %cst_9 = arith.constant 0.896774172 : f32
    %26 = vector.broadcast %cst_9 : f32 to vector<8x1xf32>
    %27 = arith.mulf %26, %25 : vector<8x1xf32>
    %28 = arith.addf %24, %27 : vector<8x1xf32>
    %cst_10 = arith.constant 0.000000e+00 : f32
    %29 = vector.broadcast %cst_10 : f32 to vector<8x1xf32>
    %30 = arith.subf %29, %28 : vector<8x1xf32>
    %c0_11 = arith.constant 0 : index
    %c0_12 = arith.constant 0 : index
    %31 = vector.load %arg3[%c0_11, %c0_12] : memref<8x1xf32, #tpu.memory_space<vmem>>, vector<8x1xf32>
    tpu.vector_store %arg3[%c0_11, %c0_12], %30 {strides = array<i32>} : memref<8x1xf32, #tpu.memory_space<vmem>>, vector<8x1xf32>,
    return
  }
  func.func @transform_0(%arg0: i32) -> (i32, i32) {
    %c0_i32 = arith.constant 0 : i32
    %c0_i32_0 = arith.constant 0 : i32
    return %arg0, %c0_i32 : i32, i32
  }
  func.func @transform_1(%arg0: i32) -> (i32, i32) {
    %c0_i32 = arith.constant 0 : i32
    %c0_i32_0 = arith.constant 0 : i32
    return %arg0, %c0_i32 : i32, i32
  }
  func.func @transform_2(%arg0: i32) -> (i32, i32) {
    %c0_i32 = arith.constant 0 : i32
    %c0_i32_0 = arith.constant 0 : i32
    return %arg0, %c0_i32 : i32, i32
  }
}

</mosaic_0001>

<llo_original>
// kernel: tpu_custom_call.1
$region0: #{tpu_custom_call.1}
  #allocation0 [shape = 'u32[]', space=smem, size = 0x4, offset = 0x4, fixed_abs, tag = 'smem constant byte address 0x4 - core index']
  #allocation1 [shape = 'u32[144,128]{1,0:T(1,128)}', space=vmem, size = 0x12000, scoped, tag = 'internal scratch']
  %s0 = inlined_call_operand.vmem [shape: f32[8,32], index: 0, kind: input, shape index: {}]
  %s1 = inlined_call_operand.vmem [shape: s32[8,1], index: 1, kind: input, shape index: {}]
  %s2 = inlined_call_operand.vmem [shape: f32[8,1], index: 2, kind: output, shape index: {}]
  %s3 = sld [smem:[#allocation0]]
  $region18: #{tpu_custom_call.1} parent=0
    _
  %s5 = ssub.s32 1, %s3
  %s6 = scalar_select 0, %s5, %s3
  // Predicated region
  $region2: #{tpu_custom_call.1} parent=0 // pred_check
    _
  $region3: #{tpu_custom_call.1} parent=0 // pred_check_branch
    %8 = sbr.rel (0) target = $region5
  $region4: #{tpu_custom_call.1} parent=0 // pred_region
    _
  $region5: #{tpu_custom_call.1} parent=0 // pred_fallthru
    _
  // Predicated region
  $region6: #{tpu_custom_call.1} parent=0 // pred_check
    _
  $region7: #{tpu_custom_call.1} parent=0 // pred_check_branch
    %10 = sbr.rel (0) target = $region9
  $region8: #{tpu_custom_call.1} parent=0 // pred_region
    _
  $region9: #{tpu_custom_call.1} parent=0 // pred_fallthru
    _
  %v11 = vld [vmem:[%s0] sm:$0xff]
  %vm12 = vcmask 261120
  %v13 = vsel %vm12, %v11, -inf
  %14 = vmax.xlane.f32.xlu0 %v13
  %v15 = vpop.xlane.xlu0 %14
  %v16 = vsub.f32 %v11, %v15
  %v17 = vmul.f32 %v16, 1.442695
  %v18 = vpow.pop %v17
  %v19 = vsel %vm12, %v18, 0.0
  %20 = vadd.xlane.f32.xlu0 %v19
  %v21 = vpop.xlane.xlu0 %20
  %v22 = vlog2.pop %v21
  %v23 = vmul.f32 %v22, 0.6931472
  %v24 = vadd.f32 %v23, %v15
  %v25 = vsel %vm12, %v11, 0.0
  %26 = vadd.xlane.f32.xlu0 %v25
  %v27 = vpop.xlane.xlu0 %26
  %v28 = vld [vmem:[%s1] sm:$0xff]
  %v29 = vlaneseq
  %v30 = vand.u32 %v29, 127
  %31 = vset.pattern.permute.xlu0 0
  %32 = vperm.xlu0 %31, %v28
  %v33 = vpop.permute.xlu0 %32
  %vm34 = vcmp.eq.s32.totalorder %v30, %v33
  %v35 = vsel %vm34, %v11, 0.0
  %v36 = vsel %vm12, %v35, 0.0
  %37 = vadd.xlane.f32.xlu0 %v36
  %v38 = vpop.xlane.xlu0 %37
  %v39 = vmul.f32 %v24, 32.0
  %v40 = vsub.f32 %v27, %v39
  %v41 = vmul.f32 %v40, 0.0032258064
  %v42 = vsub.f32 %v38, %v24
  %v43 = vmul.f32 %v42, 0.8967742
  %v44 = vadd.f32 %v41, %v43
  %v45 = vsub.f32 0.0, %v44
  %vm46 = vcmask 7168
  %47 = vst.msk [vmem:[%s2] sm:$0xff] %vm46, %v45
  // Predicated region
  $region10: #{tpu_custom_call.1} parent=0 // pred_check
    _
  $region11: #{tpu_custom_call.1} parent=0 // pred_check_branch
    %49 = sbr.rel (0) target = $region13
  $region12: #{tpu_custom_call.1} parent=0 // pred_region
    _
  $region13: #{tpu_custom_call.1} parent=0 // pred_fallthru
    _
  // Predicated region
  $region14: #{tpu_custom_call.1} parent=0 // pred_check
    _
  $region15: #{tpu_custom_call.1} parent=0 // pred_check_branch
    %51 = sbr.rel (0) target = $region17
  $region16: #{tpu_custom_call.1} parent=0 // pred_region
    _
  $region17: #{tpu_custom_call.1} parent=0 // pred_fallthru
    _

</llo_original>
